<compile_context>
chip_gen: v7x
topology: tpu7x:2x2x1
jax: 0.10.0
libtpu: 0.0.40
codegen_flags: <defaults>
</compile_context>

<pallas_src>
import jax
import jax.numpy as jnp
from jax.experimental import pallas as pl
from jax.experimental.pallas import tpu as pltpu


# ------------------------------ fused kernel ---------------------------------
def _classifier_kernel(x_ref, w1_ref, b1_ref, w2_ref, b2_ref, w3_ref, b3_ref,
                       o_ref):
    # fc1 + sigmoid  (bf16 MXU inputs, f32 accumulation, f32 elementwise)
    x = x_ref[...].astype(jnp.bfloat16)                            # (B, K)
    h1 = jnp.dot(x, w1_ref[...],
                 preferred_element_type=jnp.float32) + b1_ref[...]  # (B, 512)
    h1 = pl.reciprocal(1.0 + jnp.exp(-h1), approx=True)             # sigmoid

    # fc2 + sigmoid
    h2 = jnp.dot(h1.astype(jnp.bfloat16), w2_ref[...],
                 preferred_element_type=jnp.float32) + b2_ref[...]  # (B, 64)
    h2 = pl.reciprocal(1.0 + jnp.exp(-h2), approx=True)

    # fc3: N=1 matmul done as VPU multiply + lane reduction (no MXU).
    # w3_ref is the (1, 64) weight row; b3 is a scalar in SMEM.
    logits = jnp.sum(h2 * w3_ref[...], axis=-1, keepdims=True) + b3_ref[0]  # (B,1)

    # torch.softmax(x, 0): softmax over the batch (sublane) dimension.
    m = jnp.max(logits, axis=0, keepdims=True)
    e = jnp.exp(logits - m)
    o_ref[...] = e * pl.reciprocal(jnp.sum(e, axis=0, keepdims=True), approx=True)


def classifier_forward(x, params):
    """x: (B, input_size) f32. Returns softmax-over-batch output of shape (B, 1)."""
    w1, b1, w2, b2, w3, b3 = params
    B = x.shape[0]
    vmem = pl.BlockSpec(memory_space=pltpu.MemorySpace.VMEM)
    smem = pl.BlockSpec(memory_space=pltpu.MemorySpace.SMEM)
    return pl.pallas_call(
        _classifier_kernel,
        out_shape=jax.ShapeDtypeStruct((B, 1), jnp.float32),
        in_specs=[vmem, vmem, vmem, vmem, vmem, vmem, smem],
        out_specs=vmem,
    )(x, w1, b1, w2, b2, w3, b3)


# ---------------------------- parameter setup ---------------------------------
def _linear_init(key, fan_in, fan_out):
    """PyTorch nn.Linear default init; weight stored as (in, out) so y = x @ W + b."""
    kw, kb = jax.random.split(key)
    bound = 1.0 / (fan_in ** 0.5)
    w = jax.random.uniform(kw, (fan_in, fan_out), jnp.float32, -bound, bound)
    b = jax.random.uniform(kb, (fan_out,), jnp.float32, -bound, bound)
    return w, b


def init_classifier(key, input_size):
    k1, k2, k3 = jax.random.split(key, 3)
    w1, b1 = _linear_init(k1, input_size, 512)
    w2, b2 = _linear_init(k2, 512, 64)
    w3, b3 = _linear_init(k3, 64, 1)
    # bf16 weights for the two MXU matmuls (f32 accumulation in-kernel);
    # w3 kept f32 as a (1,64) row for the VPU reduce; b3 is an SMEM scalar.
    return (w1.astype(jnp.bfloat16), b1.reshape(1, 512),
            w2.astype(jnp.bfloat16), b2.reshape(1, 64),
            w3.reshape(1, 64).astype(jnp.float32),
            b3.reshape(1))


# ------------------------ pure-JAX reference (same dtypes) ---------------------
def classifier_ref(x, params):
    w1, b1, w2, b2, w3, b3 = params
    h1 = jax.nn.sigmoid(jnp.dot(x.astype(jnp.bfloat16), w1,
                                preferred_element_type=jnp.float32) + b1)
    h2 = jax.nn.sigmoid(jnp.dot(h1.astype(jnp.bfloat16), w2,
                                preferred_element_type=jnp.float32) + b2)
    logits = jnp.sum(h2 * w3, axis=-1, keepdims=True) + b3[0]
    return jax.nn.softmax(logits, axis=0)


# ------------------------------------ main -------------------------------------
if __name__ == "__main__":
    B = 8
    input_size = 720   # classifier input feature size (no padding required)

    key = jax.random.PRNGKey(0)
    kx, kp = jax.random.split(key)
    x = jax.random.normal(kx, (B, input_size), dtype=jnp.float32)
    params = init_classifier(kp, input_size)

    out = classifier_forward(x, params)
    jax.block_until_ready(out)

    assert out.shape == (B, 1)
    # softmax over the batch dimension -> column sums to ~1 (approx reciprocal)
    assert bool(jnp.allclose(jnp.sum(out, axis=0), 1.0, atol=1e-2))
    # matches the pure-JAX reference (approx EUP reciprocal + bf16 weights budget)
    ref = classifier_ref(x, params)
    assert bool(jnp.allclose(out, ref, atol=1e-2)), (out, ref)

    print("KERNEL_OK")
</pallas_src>

<mosaic_0001>
module attributes {stable_mosaic.version = 11 : i64} {
  func.func @_classifier_kernel(%arg0: memref<8x720xf32, #tpu.memory_space<vmem>>, %arg1: memref<720x512xbf16, #tpu.memory_space<vmem>>, %arg2: memref<1x512xf32, #tpu.memory_space<vmem>>, %arg3: memref<512x64xbf16, #tpu.memory_space<vmem>>, %arg4: memref<1x64xf32, #tpu.memory_space<vmem>>, %arg5: memref<1x64xf32, #tpu.memory_space<vmem>>, %arg6: memref<1xf32, #tpu.memory_space<smem>>, %arg7: memref<8x1xf32, #tpu.memory_space<vmem>>) attributes {dimension_semantics = [], scalar_prefetch = 0 : i64, scratch_operands = 0 : i64, tpu.core_type = #tpu.core_type<tc>} {
    %c0 = arith.constant 0 : index
    %c0_0 = arith.constant 0 : index
    %0 = vector.load %arg0[%c0, %c0_0] : memref<8x720xf32, #tpu.memory_space<vmem>>, vector<8x720xf32>
    %1 = arith.truncf %0 : vector<8x720xf32> to vector<8x720xbf16>
    %c0_1 = arith.constant 0 : index
    %c0_2 = arith.constant 0 : index
    %2 = vector.load %arg1[%c0_1, %c0_2] : memref<720x512xbf16, #tpu.memory_space<vmem>>, vector<720x512xbf16>
    %cst = arith.constant dense<0.000000e+00> : vector<8x512xf32>
    %3 = tpu.matmul %1, %2, %cst {dimension_numbers = #tpu.dot_dimension_numbers<[1], [0], [0], [1], [0, 0, 1, 1], [], []>} : vector<8x720xbf16>, vector<720x512xbf16>, vector<8x512xf32> -> vector<8x512xf32>
    %c0_3 = arith.constant 0 : index
    %c0_4 = arith.constant 0 : index
    %4 = vector.load %arg2[%c0_3, %c0_4] : memref<1x512xf32, #tpu.memory_space<vmem>>, vector<1x512xf32>
    %5 = vector.broadcast %4 : vector<1x512xf32> to vector<8x512xf32>
    %6 = arith.addf %3, %5 : vector<8x512xf32>
    %cst_5 = arith.constant 0.000000e+00 : f32
    %7 = vector.broadcast %cst_5 : f32 to vector<8x512xf32>
    %8 = arith.subf %7, %6 : vector<8x512xf32>
    %9 = math.exp %8 : vector<8x512xf32>
    %cst_6 = arith.constant 1.000000e+00 : f32
    %10 = vector.broadcast %cst_6 : f32 to vector<8x512xf32>
    %11 = arith.addf %10, %9 : vector<8x512xf32>
    %12 = tpu.reciprocal %11 {approx = true} : vector<8x512xf32> -> vector<8x512xf32>
    %13 = arith.truncf %12 : vector<8x512xf32> to vector<8x512xbf16>
    %c0_7 = arith.constant 0 : index
    %c0_8 = arith.constant 0 : index
    %14 = vector.load %arg3[%c0_7, %c0_8] : memref<512x64xbf16, #tpu.memory_space<vmem>>, vector<512x64xbf16>
    %cst_9 = arith.constant dense<0.000000e+00> : vector<8x64xf32>
    %15 = tpu.matmul %13, %14, %cst_9 {dimension_numbers = #tpu.dot_dimension_numbers<[1], [0], [0], [1], [0, 0, 1, 1], [], []>} : vector<8x512xbf16>, vector<512x64xbf16>, vector<8x64xf32> -> vector<8x64xf32>
    %c0_10 = arith.constant 0 : index
    %c0_11 = arith.constant 0 : index
    %16 = vector.load %arg4[%c0_10, %c0_11] : memref<1x64xf32, #tpu.memory_space<vmem>>, vector<1x64xf32>
    %17 = vector.broadcast %16 : vector<1x64xf32> to vector<8x64xf32>
    %18 = arith.addf %15, %17 : vector<8x64xf32>
    %cst_12 = arith.constant 0.000000e+00 : f32
    %19 = vector.broadcast %cst_12 : f32 to vector<8x64xf32>
    %20 = arith.subf %19, %18 : vector<8x64xf32>
    %21 = math.exp %20 : vector<8x64xf32>
    %cst_13 = arith.constant 1.000000e+00 : f32
    %22 = vector.broadcast %cst_13 : f32 to vector<8x64xf32>
    %23 = arith.addf %22, %21 : vector<8x64xf32>
    %24 = tpu.reciprocal %23 {approx = true} : vector<8x64xf32> -> vector<8x64xf32>
    %c0_14 = arith.constant 0 : index
    %c0_15 = arith.constant 0 : index
    %25 = vector.load %arg5[%c0_14, %c0_15] : memref<1x64xf32, #tpu.memory_space<vmem>>, vector<1x64xf32>
    %26 = vector.broadcast %25 : vector<1x64xf32> to vector<8x64xf32>
    %27 = arith.mulf %24, %26 : vector<8x64xf32>
    %cst_16 = arith.constant dense<0.000000e+00> : vector<8xf32>
    %28 = vector.multi_reduction <add>, %27, %cst_16 [1] : vector<8x64xf32> to vector<8xf32>
    %29 = vector.shape_cast %28 : vector<8xf32> to vector<8x1xf32>
    %c0_17 = arith.constant 0 : index
    %30 = memref.load %arg6[%c0_17] : memref<1xf32, #tpu.memory_space<smem>>
    %31 = vector.broadcast %30 : f32 to vector<8x1xf32>
    %32 = arith.addf %29, %31 : vector<8x1xf32>
    %cst_18 = arith.constant dense<0xFF800000> : vector<1xf32>
    %33 = vector.multi_reduction <maximumf>, %32, %cst_18 [0] : vector<8x1xf32> to vector<1xf32>
    %34 = vector.shape_cast %33 : vector<1xf32> to vector<1x1xf32>
    %35 = vector.broadcast %34 : vector<1x1xf32> to vector<8x1xf32>
    %36 = arith.subf %32, %35 : vector<8x1xf32>
    %37 = math.exp %36 : vector<8x1xf32>
    %cst_19 = arith.constant dense<0.000000e+00> : vector<1xf32>
    %38 = vector.multi_reduction <add>, %37, %cst_19 [0] : vector<8x1xf32> to vector<1xf32>
    %39 = vector.shape_cast %38 : vector<1xf32> to vector<1x1xf32>
    %40 = tpu.reciprocal %39 {approx = true} : vector<1x1xf32> -> vector<1x1xf32>
    %41 = vector.broadcast %40 : vector<1x1xf32> to vector<8x1xf32>
    %42 = arith.mulf %37, %41 : vector<8x1xf32>
    %c0_20 = arith.constant 0 : index
    %c0_21 = arith.constant 0 : index
    %43 = vector.load %arg7[%c0_20, %c0_21] : memref<8x1xf32, #tpu.memory_space<vmem>>, vector<8x1xf32>
    tpu.vector_store %arg7[%c0_20, %c0_21], %42 {strides = array<i32>} : memref<8x1xf32, #tpu.memory_space<vmem>>, vector<8x1xf32>,
    return
  }
}

</mosaic_0001>

<llo_original>
// kernel: tpu_custom_call.1
$region0: #{tpu_custom_call.1}
  #allocation0 [shape = 'u32[]', space=smem, size = 0x4, offset = 0x4, fixed_abs, tag = 'smem constant byte address 0x4 - core index']
  #allocation1 [shape = 'u32[144,128]{1,0:T(1,128)}', space=vmem, size = 0x12000, scoped, tag = 'internal scratch']
  #allocation2 [shape = 'f32[1]{0:T(128)S(6)}', space=smem, size = 0x200, scoped, tag = 'scoped memory for tpu_custom_call.1']
  %s0 = inlined_call_operand.vmem [shape: f32[8,720], index: 0, kind: input, shape index: {}]
  %s1 = inlined_call_operand.hbm [shape: bf16[720,512], index: 1, kind: input, shape index: {}]
  %s2 = inlined_call_operand.vmem [shape: f32[1,512], index: 2, kind: input, shape index: {}]
  %s3 = inlined_call_operand.vmem [shape: bf16[512,64], index: 3, kind: input, shape index: {}]
  %s4 = inlined_call_operand.vmem [shape: f32[1,64], index: 4, kind: input, shape index: {}]
  %s5 = inlined_call_operand.vmem [shape: f32[1,64], index: 5, kind: input, shape index: {}]
  %s6 = inlined_call_operand.<no memory space> [shape: f32[1], index: 6, kind: input, shape index: {}]
  %s7 = inlined_call_operand.vmem [shape: f32[8,1], index: 7, kind: output, shape index: {}]
  %s8 = sld [smem:[#allocation0]]
  $region42: #{tpu_custom_call.1} parent=0
    _
  %s10 = ssub.s32 1, %s8
  %s11 = scalar_select 0, %s10, %s8
  %12 = sst [smem:[#allocation2]] %s6
  $region1: #{tpu_custom_call.1} parent=0
    #allocation3 [shape = 'u8[737280]{0}', space=vmem, size = 0xb4000, scoped, tag = 'input window, operand 1, single buffered']
    #allocation4 [shape = 's32[1]{0}', space=sflag, size = 0x4, scoped, tag = 'scoped memory for tpu_custom_call.1']
    %13 = vsyncpa [#allocation4], 0
    // Predicated region
    $region2: #{tpu_custom_call.1} parent=1 // pred_check
      _
    $region3: #{tpu_custom_call.1} parent=1 // pred_check_branch
      %15 = sbr.rel (0) target = $region5
    $region4: #{tpu_custom_call.1} parent=1 // pred_region
      _
    $region5: #{tpu_custom_call.1} parent=1 // pred_fallthru
      _
    // Predicated region
    $region6: #{tpu_custom_call.1} parent=1 // pred_check
      _
    $region7: #{tpu_custom_call.1} parent=1 // pred_check_branch
      %17 = sbr.rel (0) target = $region9
    $region8: #{tpu_custom_call.1} parent=1 // pred_region
      %s19 = ssub.s32 23040, 23040
      %20 = vsyncadd [#allocation4], %s19
      %s21 = sshll.u32 [#allocation3], 4
      %s22 = int_to_ptr.vmem [resolvable:$true] %s21
      %27 = dma.hbm_to_vmem [thread:$0]  %s1, 23040, %s22, [#allocation4], 256, 256, 16
    $region9: #{tpu_custom_call.1} parent=1 // pred_fallthru
      _
    // Predicated region
    $region10: #{tpu_custom_call.1} parent=1 // pred_check
      _
    $region11: #{tpu_custom_call.1} parent=1 // pred_check_branch
      %29 = sbr.rel (0) target = $region13
    $region12: #{tpu_custom_call.1} parent=1 // pred_region
      _
    $region13: #{tpu_custom_call.1} parent=1 // pred_fallthru
      _
    // Predicated region
    $region14: #{tpu_custom_call.1} parent=1 // pred_check
      _
    $region15: #{tpu_custom_call.1} parent=1 // pred_check_branch
      %31 = sbr.rel (0) target = $region17
    $region16: #{tpu_custom_call.1} parent=1 // pred_region
      _
    $region17: #{tpu_custom_call.1} parent=1 // pred_fallthru
      _
    // Predicated region
    $region18: #{tpu_custom_call.1} parent=1 // pred_check
      _
    $region19: #{tpu_custom_call.1} parent=1 // pred_check_branch
      %33 = sbr.rel (0) target = $region21
    $region20: #{tpu_custom_call.1} parent=1 // pred_region
      _
    $region21: #{tpu_custom_call.1} parent=1 // pred_fallthru
      _
    // Predicated region
    $region22: #{tpu_custom_call.1} parent=1 // pred_check
      _
    $region23: #{tpu_custom_call.1} parent=1 // pred_check_branch
      %35 = sbr.rel (0) target = $region25
    $region24: #{tpu_custom_call.1} parent=1 // pred_region
      _
    $region25: #{tpu_custom_call.1} parent=1 // pred_fallthru
      _
    // Predicated region
    $region26: #{tpu_custom_call.1} parent=1 // pred_check
      _
    $region27: #{tpu_custom_call.1} parent=1 // pred_check_branch
      %37 = sbr.rel (0) target = $region29
    $region28: #{tpu_custom_call.1} parent=1 // pred_region
      _
    $region29: #{tpu_custom_call.1} parent=1 // pred_fallthru
      _
    // Predicated region
    $region30: #{tpu_custom_call.1} parent=1 // pred_check
      _
    $region31: #{tpu_custom_call.1} parent=1 // pred_check_branch
      %39 = sbr.rel (0) target = $region33
    $region32: #{tpu_custom_call.1} parent=1 // pred_region
      %40 = dma.done [#allocation4], 23040
    $region33: #{tpu_custom_call.1} parent=1 // pred_fallthru
      _
    %v42 = vld [vmem:[%s0] sm:$0xff]
    %v43 = vld [vmem:[%s0 + $0x8] sm:$0xff]
    %v44 = vld [vmem:[%s0 + $0x10] sm:$0xff]
    %v45 = vld [vmem:[%s0 + $0x18] sm:$0xff]
    %v46 = vld [vmem:[%s0 + $0x20] sm:$0xff]
    %v47 = vld [vmem:[%s0 + $0x28] sm:$0xff]
    %v48 = vpack.c.bf16 %v42, %v42
    %v49 = vpack.c.bf16 %v43, %v43
    %v50 = vpack.c.bf16 %v44, %v44
    %v51 = vpack.c.bf16 %v45, %v45
    %v52 = vpack.c.bf16 %v46, %v46
    %v53 = vpack.c.bf16 %v47, %v47
    %v54 = vld [vmem:[#allocation3] sm:$0xff]
    %v55 = vld [vmem:[#allocation3 + $0x8] sm:$0xff]
    %v56 = vld [vmem:[#allocation3 + $0x10] sm:$0xff]
    %v57 = vld [vmem:[#allocation3 + $0x18] sm:$0xff]
    %v58 = vld [vmem:[#allocation3 + $0x20] sm:$0xff]
    %v59 = vld [vmem:[#allocation3 + $0x28] sm:$0xff]
    %v60 = vld [vmem:[#allocation3 + $0x30] sm:$0xff]
    %v61 = vld [vmem:[#allocation3 + $0x38] sm:$0xff]
    %v62 = vld [vmem:[#allocation3 + $0x40] sm:$0xff]
    %v63 = vld [vmem:[#allocation3 + $0x48] sm:$0xff]
    %v64 = vld [vmem:[#allocation3 + $0x50] sm:$0xff]
    %v65 = vld [vmem:[#allocation3 + $0x58] sm:$0xff]
    %v66 = vld [vmem:[#allocation3 + $0x60] sm:$0xff]
    %v67 = vld [vmem:[#allocation3 + $0x68] sm:$0xff]
    %v68 = vld [vmem:[#allocation3 + $0x70] sm:$0xff]
    %v69 = vld [vmem:[#allocation3 + $0x78] sm:$0xff]
    %v70 = vld [vmem:[#allocation3 + $0x80] sm:$0xff]
    %v71 = vld [vmem:[#allocation3 + $0x88] sm:$0xff]
    %v72 = vld [vmem:[#allocation3 + $0x90] sm:$0xff]
    %v73 = vld [vmem:[#allocation3 + $0x98] sm:$0xff]
    %v74 = vld [vmem:[#allocation3 + $0xa0] sm:$0xff]
    %v75 = vld [vmem:[#allocation3 + $0xa8] sm:$0xff]
    %v76 = vld [vmem:[#allocation3 + $0xb0] sm:$0xff]
    %v77 = vld [vmem:[#allocation3 + $0xb8] sm:$0xff]
    %v78 = vld [vmem:[#allocation3 + $0xc0] sm:$0xff]
    %v79 = vld [vmem:[#allocation3 + $0xc8] sm:$0xff]
    %v80 = vld [vmem:[#allocation3 + $0xd0] sm:$0xff]
    %v81 = vld [vmem:[#allocation3 + $0xd8] sm:$0xff]
    %v82 = vld [vmem:[#allocation3 + $0xe0] sm:$0xff]
    %v83 = vld [vmem:[#allocation3 + $0xe8] sm:$0xff]
    %v84 = vld [vmem:[#allocation3 + $0xf0] sm:$0xff]
    %v85 = vld [vmem:[#allocation3 + $0xf8] sm:$0xff]
    %v86 = vld [vmem:[#allocation3 + $0x100] sm:$0xff]
    %v87 = vld [vmem:[#allocation3 + $0x108] sm:$0xff]
    %v88 = vld [vmem:[#allocation3 + $0x110] sm:$0xff]
    %v89 = vld [vmem:[#allocation3 + $0x118] sm:$0xff]
    %v90 = vld [vmem:[#allocation3 + $0x120] sm:$0xff]
    %v91 = vld [vmem:[#allocation3 + $0x128] sm:$0xff]
    %v92 = vld [vmem:[#allocation3 + $0x130] sm:$0xff]
    %v93 = vld [vmem:[#allocation3 + $0x138] sm:$0xff]
    %v94 = vld [vmem:[#allocation3 + $0x140] sm:$0xff]
    %v95 = vld [vmem:[#allocation3 + $0x148] sm:$0xff]
    %v96 = vld [vmem:[#allocation3 + $0x150] sm:$0xff]
    %v97 = vld [vmem:[#allocation3 + $0x158] sm:$0xff]
    %v98 = vld [vmem:[#allocation3 + $0x160] sm:$0xff]
    %v99 = vld [vmem:[#allocation3 + $0x168] sm:$0xff]
    %v100 = vld [vmem:[#allocation3 + $0x170] sm:$0xff]
    %v101 = vld [vmem:[#allocation3 + $0x178] sm:$0xff]
    %v102 = vld [vmem:[#allocation3 + $0x180] sm:$0xff]
    %v103 = vld [vmem:[#allocation3 + $0x188] sm:$0xff]
    %v104 = vld [vmem:[#allocation3 + $0x190] sm:$0xff]
    %v105 = vld [vmem:[#allocation3 + $0x198] sm:$0xff]
    %v106 = vld [vmem:[#allocation3 + $0x1a0] sm:$0xff]
    %v107 = vld [vmem:[#allocation3 + $0x1a8] sm:$0xff]
    %v108 = vld [vmem:[#allocation3 + $0x1b0] sm:$0xff]
    %v109 = vld [vmem:[#allocation3 + $0x1b8] sm:$0xff]
    %v110 = vld [vmem:[#allocation3 + $0x1c0] sm:$0xff]
    %v111 = vld [vmem:[#allocation3 + $0x1c8] sm:$0xff]
    %v112 = vld [vmem:[#allocation3 + $0x1d0] sm:$0xff]
    %v113 = vld [vmem:[#allocation3 + $0x1d8] sm:$0xff]
    %v114 = vld [vmem:[#allocation3 + $0x1e0] sm:$0xff]
    %v115 = vld [vmem:[#allocation3 + $0x1e8] sm:$0xff]
    %v116 = vld [vmem:[#allocation3 + $0x1f0] sm:$0xff]
    %v117 = vld [vmem:[#allocation3 + $0x1f8] sm:$0xff]
    %v118 = vld [vmem:[#allocation3 + $0x200] sm:$0xff]
    %v119 = vld [vmem:[#allocation3 + $0x208] sm:$0xff]
    %v120 = vld [vmem:[#allocation3 + $0x210] sm:$0xff]
    %v121 = vld [vmem:[#allocation3 + $0x218] sm:$0xff]
    %v122 = vld [vmem:[#allocation3 + $0x220] sm:$0xff]
    %v123 = vld [vmem:[#allocation3 + $0x228] sm:$0xff]
    %v124 = vld [vmem:[#allocation3 + $0x230] sm:$0xff]
    %v125 = vld [vmem:[#allocation3 + $0x238] sm:$0xff]
    %v126 = vld [vmem:[#allocation3 + $0x240] sm:$0xff]
    %v127 = vld [vmem:[#allocation3 + $0x248] sm:$0xff]
    %v128 = vld [vmem:[#allocation3 + $0x250] sm:$0xff]
    %v129 = vld [vmem:[#allocation3 + $0x258] sm:$0xff]
    %v130 = vld [vmem:[#allocation3 + $0x260] sm:$0xff]
    %v131 = vld [vmem:[#allocation3 + $0x268] sm:$0xff]
    %v132 = vld [vmem:[#allocation3 + $0x270] sm:$0xff]
    %v133 = vld [vmem:[#allocation3 + $0x278] sm:$0xff]
    %v134 = vld [vmem:[#allocation3 + $0x280] sm:$0xff]
    %v135 = vld [vmem:[#allocation3 + $0x288] sm:$0xff]
    %v136 = vld [vmem:[#allocation3 + $0x290] sm:$0xff]
    %v137 = vld [vmem:[#allocation3 + $0x298] sm:$0xff]
    %v138 = vld [vmem:[#allocation3 + $0x2a0] sm:$0xff]
    %v139 = vld [vmem:[#allocation3 + $0x2a8] sm:$0xff]
    %v140 = vld [vmem:[#allocation3 + $0x2b0] sm:$0xff]
    %v141 = vld [vmem:[#allocation3 + $0x2b8] sm:$0xff]
    %v142 = vld [vmem:[#allocation3 + $0x2c0] sm:$0xff]
    %v143 = vld [vmem:[#allocation3 + $0x2c8] sm:$0xff]
    %v144 = vld [vmem:[#allocation3 + $0x2d0] sm:$0xff]
    %v145 = vld [vmem:[#allocation3 + $0x2d8] sm:$0xff]
    %v146 = vld [vmem:[#allocation3 + $0x2e0] sm:$0xff]
    %v147 = vld [vmem:[#allocation3 + $0x2e8] sm:$0xff]
    %v148 = vld [vmem:[#allocation3 + $0x2f0] sm:$0xff]
    %v149 = vld [vmem:[#allocation3 + $0x2f8] sm:$0xff]
    %v150 = vld [vmem:[#allocation3 + $0x300] sm:$0xff]
    %v151 = vld [vmem:[#allocation3 + $0x308] sm:$0xff]
    %v152 = vld [vmem:[#allocation3 + $0x310] sm:$0xff]
    %v153 = vld [vmem:[#allocation3 + $0x318] sm:$0xff]
    %v154 = vld [vmem:[#allocation3 + $0x320] sm:$0xff]
    %v155 = vld [vmem:[#allocation3 + $0x328] sm:$0xff]
    %v156 = vld [vmem:[#allocation3 + $0x330] sm:$0xff]
    %v157 = vld [vmem:[#allocation3 + $0x338] sm:$0xff]
    %v158 = vld [vmem:[#allocation3 + $0x340] sm:$0xff]
    %v159 = vld [vmem:[#allocation3 + $0x348] sm:$0xff]
    %v160 = vld [vmem:[#allocation3 + $0x350] sm:$0xff]
    %v161 = vld [vmem:[#allocation3 + $0x358] sm:$0xff]
    %v162 = vld [vmem:[#allocation3 + $0x360] sm:$0xff]
    %v163 = vld [vmem:[#allocation3 + $0x368] sm:$0xff]
    %v164 = vld [vmem:[#allocation3 + $0x370] sm:$0xff]
    %v165 = vld [vmem:[#allocation3 + $0x378] sm:$0xff]
    %v166 = vld [vmem:[#allocation3 + $0x380] sm:$0xff]
    %v167 = vld [vmem:[#allocation3 + $0x388] sm:$0xff]
    %v168 = vld [vmem:[#allocation3 + $0x390] sm:$0xff]
    %v169 = vld [vmem:[#allocation3 + $0x398] sm:$0xff]
    %v170 = vld [vmem:[#allocation3 + $0x3a0] sm:$0xff]
    %v171 = vld [vmem:[#allocation3 + $0x3a8] sm:$0xff]
    %v172 = vld [vmem:[#allocation3 + $0x3b0] sm:$0xff]
    %v173 = vld [vmem:[#allocation3 + $0x3b8] sm:$0xff]
    %v174 = vld [vmem:[#allocation3 + $0x3c0] sm:$0xff]
    %v175 = vld [vmem:[#allocation3 + $0x3c8] sm:$0xff]
    %v176 = vld [vmem:[#allocation3 + $0x3d0] sm:$0xff]
    %v177 = vld [vmem:[#allocation3 + $0x3d8] sm:$0xff]
    %v178 = vld [vmem:[#allocation3 + $0x3e0] sm:$0xff]
    %v179 = vld [vmem:[#allocation3 + $0x3e8] sm:$0xff]
    %v180 = vld [vmem:[#allocation3 + $0x3f0] sm:$0xff]
    %v181 = vld [vmem:[#allocation3 + $0x3f8] sm:$0xff]
    %v182 = vld [vmem:[#allocation3 + $0x400] sm:$0xff]
    %v183 = vld [vmem:[#allocation3 + $0x408] sm:$0xff]
    %v184 = vld [vmem:[#allocation3 + $0x410] sm:$0xff]
    %v185 = vld [vmem:[#allocation3 + $0x418] sm:$0xff]
    %v186 = vld [vmem:[#allocation3 + $0x420] sm:$0xff]
    %v187 = vld [vmem:[#allocation3 + $0x428] sm:$0xff]
    %v188 = vld [vmem:[#allocation3 + $0x430] sm:$0xff]
    %v189 = vld [vmem:[#allocation3 + $0x438] sm:$0xff]
    %v190 = vld [vmem:[#allocation3 + $0x440] sm:$0xff]
    %v191 = vld [vmem:[#allocation3 + $0x448] sm:$0xff]
    %v192 = vld [vmem:[#allocation3 + $0x450] sm:$0xff]
    %v193 = vld [vmem:[#allocation3 + $0x458] sm:$0xff]
    %v194 = vld [vmem:[#allocation3 + $0x460] sm:$0xff]
    %v195 = vld [vmem:[#allocation3 + $0x468] sm:$0xff]
    %v196 = vld [vmem:[#allocation3 + $0x470] sm:$0xff]
    %v197 = vld [vmem:[#allocation3 + $0x478] sm:$0xff]
    %v198 = vld [vmem:[#allocation3 + $0x480] sm:$0xff]
    %v199 = vld [vmem:[#allocation3 + $0x488] sm:$0xff]
    %v200 = vld [vmem:[#allocation3 + $0x490] sm:$0xff]
    %v201 = vld [vmem:[#allocation3 + $0x498] sm:$0xff]
    %v202 = vld [vmem:[#allocation3 + $0x4a0] sm:$0xff]
    %v203 = vld [vmem:[#allocation3 + $0x4a8] sm:$0xff]
    %v204 = vld [vmem:[#allocation3 + $0x4b0] sm:$0xff]
    %v205 = vld [vmem:[#allocation3 + $0x4b8] sm:$0xff]
    %v206 = vld [vmem:[#allocation3 + $0x4c0] sm:$0xff]
    %v207 = vld [vmem:[#allocation3 + $0x4c8] sm:$0xff]
    %v208 = vld [vmem:[#allocation3 + $0x4d0] sm:$0xff]
    %v209 = vld [vmem:[#allocation3 + $0x4d8] sm:$0xff]
    %v210 = vld [vmem:[#allocation3 + $0x4e0] sm:$0xff]
    %v211 = vld [vmem:[#allocation3 + $0x4e8] sm:$0xff]
    %v212 = vld [vmem:[#allocation3 + $0x4f0] sm:$0xff]
    %v213 = vld [vmem:[#allocation3 + $0x4f8] sm:$0xff]
    %v214 = vld [vmem:[#allocation3 + $0x500] sm:$0xff]
    %v215 = vld [vmem:[#allocation3 + $0x508] sm:$0xff]
    %v216 = vld [vmem:[#allocation3 + $0x510] sm:$0xff]
    %v217 = vld [vmem:[#allocation3 + $0x518] sm:$0xff]
    %v218 = vld [vmem:[#allocation3 + $0x520] sm:$0xff]
    %v219 = vld [vmem:[#allocation3 + $0x528] sm:$0xff]
    %v220 = vld [vmem:[#allocation3 + $0x530] sm:$0xff]
    %v221 = vld [vmem:[#allocation3 + $0x538] sm:$0xff]
    %v222 = vld [vmem:[#allocation3 + $0x540] sm:$0xff]
    %v223 = vld [vmem:[#allocation3 + $0x548] sm:$0xff]
    %v224 = vld [vmem:[#allocation3 + $0x550] sm:$0xff]
    %v225 = vld [vmem:[#allocation3 + $0x558] sm:$0xff]
    %v226 = vld [vmem:[#allocation3 + $0x560] sm:$0xff]
    %v227 = vld [vmem:[#allocation3 + $0x568] sm:$0xff]
    %v228 = vld [vmem:[#allocation3 + $0x570] sm:$0xff]
    %v229 = vld [vmem:[#allocation3 + $0x578] sm:$0xff]
    %v230 = vld [vmem:[#allocation3 + $0x580] sm:$0xff]
    %v231 = vld [vmem:[#allocation3 + $0x588] sm:$0xff]
    %v232 = vld [vmem:[#allocation3 + $0x590] sm:$0xff]
    %v233 = vld [vmem:[#allocation3 + $0x598] sm:$0xff]
    %v234 = vld [vmem:[%s2] sm:$0xf]
    %v236 = vlaneseq
    %v237 = vshrl.u32 %v236, 7
    %v238 = vsub.s32 0, %v237
    %v239 = vrot.slane %v234, %v238
    %v240 = vlaneseq
    %v241 = vshrl.u32 %v240, 7
    %v242 = vsub.s32 1, %v241
    %v243 = vrot.slane %v234, %v242
    %v244 = vlaneseq
    %v245 = vshrl.u32 %v244, 7
    %v246 = vsub.s32 2, %v245
    %v247 = vrot.slane %v234, %v246
    %v248 = vlaneseq
    %v249 = vshrl.u32 %v248, 7
    %v250 = vsub.s32 3, %v249
    %v251 = vrot.slane %v234, %v250
    %v436 = vunpack.c.l.b16 %v54
    %v437 = vunpack.c.h.b16 %v54
    %v438 = vunpack.c.l.b16 %v55
    %v439 = vunpack.c.h.b16 %v55
    %v440 = vunpack.c.l.b16 %v56
    %v441 = vunpack.c.h.b16 %v56
    %v442 = vunpack.c.l.b16 %v57
    %v443 = vunpack.c.h.b16 %v57
    %v444 = vunpack.c.l.b16 %v58
    %v445 = vunpack.c.h.b16 %v58
    %v446 = vunpack.c.l.b16 %v59
    %v447 = vunpack.c.h.b16 %v59
    %v448 = vunpack.c.l.b16 %v60
    %v449 = vunpack.c.h.b16 %v60
    %v450 = vunpack.c.l.b16 %v61
    %v451 = vunpack.c.h.b16 %v61
    %v452 = vunpack.c.l.b16 %v62
    %v453 = vunpack.c.h.b16 %v62
    %v454 = vunpack.c.l.b16 %v63
    %v455 = vunpack.c.h.b16 %v63
    %v456 = vunpack.c.l.b16 %v64
    %v457 = vunpack.c.h.b16 %v64
    %v458 = vunpack.c.l.b16 %v65
    %v459 = vunpack.c.h.b16 %v65
    %v460 = vunpack.c.l.b16 %v66
    %v461 = vunpack.c.h.b16 %v66
    %v462 = vunpack.c.l.b16 %v67
    %v463 = vunpack.c.h.b16 %v67
    %v464 = vunpack.c.l.b16 %v68
    %v465 = vunpack.c.h.b16 %v68
    %v466 = vunpack.c.l.b16 %v69
    %v467 = vunpack.c.h.b16 %v69
    %v468 = vunpack.c.l.b16 %v70
    %v469 = vunpack.c.h.b16 %v70
    %v470 = vunpack.c.l.b16 %v71
    %v471 = vunpack.c.h.b16 %v71
    %v472 = vunpack.c.l.b16 %v72
    %v473 = vunpack.c.h.b16 %v72
    %v474 = vunpack.c.l.b16 %v73
    %v475 = vunpack.c.h.b16 %v73
    %v476 = vunpack.c.l.b16 %v74
    %v477 = vunpack.c.h.b16 %v74
    %v478 = vunpack.c.l.b16 %v75
    %v479 = vunpack.c.h.b16 %v75
    %v480 = vunpack.c.l.b16 %v76
    %v481 = vunpack.c.h.b16 %v76
    %v482 = vunpack.c.l.b16 %v77
    %v483 = vunpack.c.h.b16 %v77
    %v484 = vunpack.c.l.b16 %v78
    %v485 = vunpack.c.h.b16 %v78
    %v486 = vunpack.c.l.b16 %v79
    %v487 = vunpack.c.h.b16 %v79
    %v488 = vunpack.c.l.b16 %v80
    %v489 = vunpack.c.h.b16 %v80
    %v490 = vunpack.c.l.b16 %v81
    %v491 = vunpack.c.h.b16 %v81
    %v492 = vunpack.c.l.b16 %v82
    %v493 = vunpack.c.h.b16 %v82
    %v494 = vunpack.c.l.b16 %v83
    %v495 = vunpack.c.h.b16 %v83
    %v496 = vunpack.c.l.b16 %v84
    %v497 = vunpack.c.h.b16 %v84
    %v498 = vunpack.c.l.b16 %v85
    %v499 = vunpack.c.h.b16 %v85
    %v500 = vunpack.c.l.b16 %v86
    %v501 = vunpack.c.h.b16 %v86
    %v502 = vunpack.c.l.b16 %v87
    %v503 = vunpack.c.h.b16 %v87
    %v504 = vunpack.c.l.b16 %v88
    %v505 = vunpack.c.h.b16 %v88
    %v506 = vunpack.c.l.b16 %v89
    %v507 = vunpack.c.h.b16 %v89
    %v508 = vunpack.c.l.b16 %v90
    %v509 = vunpack.c.h.b16 %v90
    %v510 = vunpack.c.l.b16 %v91
    %v511 = vunpack.c.h.b16 %v91
    %v512 = vunpack.c.l.b16 %v92
    %v513 = vunpack.c.h.b16 %v92
    %v514 = vunpack.c.l.b16 %v93
    %v515 = vunpack.c.h.b16 %v93
    %v516 = vunpack.c.l.b16 %v94
    %v517 = vunpack.c.h.b16 %v94
    %v518 = vunpack.c.l.b16 %v95
    %v519 = vunpack.c.h.b16 %v95
    %v520 = vunpack.c.l.b16 %v96
    %v521 = vunpack.c.h.b16 %v96
    %v522 = vunpack.c.l.b16 %v97
    %v523 = vunpack.c.h.b16 %v97
    %v524 = vunpack.c.l.b16 %v98
    %v525 = vunpack.c.h.b16 %v98
    %v526 = vunpack.c.l.b16 %v99
    %v527 = vunpack.c.h.b16 %v99
    %v528 = vunpack.c.l.b16 %v100
    %v529 = vunpack.c.h.b16 %v100
    %v530 = vunpack.c.l.b16 %v101
    %v531 = vunpack.c.h.b16 %v101
    %v532 = vunpack.c.l.b16 %v102
    %v533 = vunpack.c.h.b16 %v102
    %v534 = vunpack.c.l.b16 %v103
    %v535 = vunpack.c.h.b16 %v103
    %v536 = vunpack.c.l.b16 %v104
    %v537 = vunpack.c.h.b16 %v104
    %v538 = vunpack.c.l.b16 %v105
    %v539 = vunpack.c.h.b16 %v105
    %v540 = vunpack.c.l.b16 %v106
    %v541 = vunpack.c.h.b16 %v106
    %v542 = vunpack.c.l.b16 %v107
    %v543 = vunpack.c.h.b16 %v107
    %v544 = vunpack.c.l.b16 %v108
    %v545 = vunpack.c.h.b16 %v108
    %v546 = vunpack.c.l.b16 %v109
    %v547 = vunpack.c.h.b16 %v109
    %v548 = vunpack.c.l.b16 %v110
    %v549 = vunpack.c.h.b16 %v110
    %v550 = vunpack.c.l.b16 %v111
    %v551 = vunpack.c.h.b16 %v111
    %v552 = vunpack.c.l.b16 %v112
    %v553 = vunpack.c.h.b16 %v112
    %v554 = vunpack.c.l.b16 %v113
    %v555 = vunpack.c.h.b16 %v113
    %v556 = vunpack.c.l.b16 %v114
    %v557 = vunpack.c.h.b16 %v114
    %v558 = vunpack.c.l.b16 %v115
    %v559 = vunpack.c.h.b16 %v115
    %v560 = vunpack.c.l.b16 %v116
    %v561 = vunpack.c.h.b16 %v116
    %v562 = vunpack.c.l.b16 %v117
    %v563 = vunpack.c.h.b16 %v117
    %v564 = vunpack.c.l.b16 %v118
    %v565 = vunpack.c.h.b16 %v118
    %v566 = vunpack.c.l.b16 %v119
    %v567 = vunpack.c.h.b16 %v119
    %v568 = vunpack.c.l.b16 %v120
    %v569 = vunpack.c.h.b16 %v120
    %v570 = vunpack.c.l.b16 %v121
    %v571 = vunpack.c.h.b16 %v121
    %v572 = vunpack.c.l.b16 %v122
    %v573 = vunpack.c.h.b16 %v122
    %v574 = vunpack.c.l.b16 %v123
    %v575 = vunpack.c.h.b16 %v123
    %v576 = vunpack.c.l.b16 %v124
    %v577 = vunpack.c.h.b16 %v124
    %v578 = vunpack.c.l.b16 %v125
    %v579 = vunpack.c.h.b16 %v125
    %v580 = vunpack.c.l.b16 %v126
    %v581 = vunpack.c.h.b16 %v126
    %v582 = vunpack.c.l.b16 %v127
    %v583 = vunpack.c.h.b16 %v127
    %v584 = vunpack.c.l.b16 %v128
    %v585 = vunpack.c.h.b16 %v128
    %v586 = vunpack.c.l.b16 %v129
    %v587 = vunpack.c.h.b16 %v129
    %v588 = vunpack.c.l.b16 %v130
    %v589 = vunpack.c.h.b16 %v130
    %v590 = vunpack.c.l.b16 %v131
    %v591 = vunpack.c.h.b16 %v131
    %v592 = vunpack.c.l.b16 %v132
    %v593 = vunpack.c.h.b16 %v132
    %v594 = vunpack.c.l.b16 %v133
    %v595 = vunpack.c.h.b16 %v133
    %v596 = vunpack.c.l.b16 %v134
    %v597 = vunpack.c.h.b16 %v134
    %v598 = vunpack.c.l.b16 %v135
    %v599 = vunpack.c.h.b16 %v135
    %v600 = vunpack.c.l.b16 %v136
    %v601 = vunpack.c.h.b16 %v136
    %v602 = vunpack.c.l.b16 %v137
    %v603 = vunpack.c.h.b16 %v137
    %v604 = vunpack.c.l.b16 %v138
    %v605 = vunpack.c.h.b16 %v138
    %v606 = vunpack.c.l.b16 %v139
    %v607 = vunpack.c.h.b16 %v139
    %v608 = vunpack.c.l.b16 %v140
    %v609 = vunpack.c.h.b16 %v140
    %v610 = vunpack.c.l.b16 %v141
    %v611 = vunpack.c.h.b16 %v141
    %v612 = vunpack.c.l.b16 %v142
    %v613 = vunpack.c.h.b16 %v142
    %v614 = vunpack.c.l.b16 %v143
    %v615 = vunpack.c.h.b16 %v143
    %v616 = vunpack.c.l.b16 %v144
    %v617 = vunpack.c.h.b16 %v144
    %v618 = vunpack.c.l.b16 %v145
    %v619 = vunpack.c.h.b16 %v145
    %v620 = vunpack.c.l.b16 %v146
    %v621 = vunpack.c.h.b16 %v146
    %v622 = vunpack.c.l.b16 %v147
    %v623 = vunpack.c.h.b16 %v147
    %v624 = vunpack.c.l.b16 %v148
    %v625 = vunpack.c.h.b16 %v148
    %v626 = vunpack.c.l.b16 %v149
    %v627 = vunpack.c.h.b16 %v149
    %v628 = vunpack.c.l.b16 %v150
    %v629 = vunpack.c.h.b16 %v150
    %v630 = vunpack.c.l.b16 %v151
    %v631 = vunpack.c.h.b16 %v151
    %v632 = vunpack.c.l.b16 %v152
    %v633 = vunpack.c.h.b16 %v152
    %v634 = vunpack.c.l.b16 %v153
    %v635 = vunpack.c.h.b16 %v153
    %v636 = vunpack.c.l.b16 %v154
    %v637 = vunpack.c.h.b16 %v154
    %v638 = vunpack.c.l.b16 %v155
    %v639 = vunpack.c.h.b16 %v155
    %v640 = vunpack.c.l.b16 %v156
    %v641 = vunpack.c.h.b16 %v156
    %v642 = vunpack.c.l.b16 %v157
    %v643 = vunpack.c.h.b16 %v157
    %v644 = vunpack.c.l.b16 %v158
    %v645 = vunpack.c.h.b16 %v158
    %v646 = vunpack.c.l.b16 %v159
    %v647 = vunpack.c.h.b16 %v159
    %v648 = vunpack.c.l.b16 %v160
    %v649 = vunpack.c.h.b16 %v160
    %v650 = vunpack.c.l.b16 %v161
    %v651 = vunpack.c.h.b16 %v161
    %v652 = vunpack.c.l.b16 %v162
    %v653 = vunpack.c.h.b16 %v162
    %v654 = vunpack.c.l.b16 %v163
    %v655 = vunpack.c.h.b16 %v163
    %v656 = vunpack.c.l.b16 %v164
    %v657 = vunpack.c.h.b16 %v164
    %v658 = vunpack.c.l.b16 %v165
    %v659 = vunpack.c.h.b16 %v165
    %v660 = vunpack.c.l.b16 %v166
    %v661 = vunpack.c.h.b16 %v166
    %v662 = vunpack.c.l.b16 %v167
    %v663 = vunpack.c.h.b16 %v167
    %v664 = vunpack.c.l.b16 %v168
    %v665 = vunpack.c.h.b16 %v168
    %v666 = vunpack.c.l.b16 %v169
    %v667 = vunpack.c.h.b16 %v169
    %v668 = vunpack.c.l.b16 %v170
    %v669 = vunpack.c.h.b16 %v170
    %v670 = vunpack.c.l.b16 %v171
    %v671 = vunpack.c.h.b16 %v171
    %v672 = vunpack.c.l.b16 %v172
    %v673 = vunpack.c.h.b16 %v172
    %v674 = vunpack.c.l.b16 %v173
    %v675 = vunpack.c.h.b16 %v173
    %v676 = vunpack.c.l.b16 %v174
    %v677 = vunpack.c.h.b16 %v174
    %v678 = vunpack.c.l.b16 %v175
    %v679 = vunpack.c.h.b16 %v175
    %v680 = vunpack.c.l.b16 %v176
    %v681 = vunpack.c.h.b16 %v176
    %v682 = vunpack.c.l.b16 %v177
    %v683 = vunpack.c.h.b16 %v177
    %v684 = vunpack.c.l.b16 %v178
    %v685 = vunpack.c.h.b16 %v178
    %v686 = vunpack.c.l.b16 %v179
    %v687 = vunpack.c.h.b16 %v179
    %v688 = vunpack.c.l.b16 %v180
    %v689 = vunpack.c.h.b16 %v180
    %v690 = vunpack.c.l.b16 %v181
    %v691 = vunpack.c.h.b16 %v181
    %v692 = vunpack.c.l.b16 %v182
    %v693 = vunpack.c.h.b16 %v182
    %v694 = vunpack.c.l.b16 %v183
    %v695 = vunpack.c.h.b16 %v183
    %v696 = vunpack.c.l.b16 %v184
    %v697 = vunpack.c.h.b16 %v184
    %v698 = vunpack.c.l.b16 %v185
    %v699 = vunpack.c.h.b16 %v185
    %v700 = vunpack.c.l.b16 %v186
    %v701 = vunpack.c.h.b16 %v186
    %v702 = vunpack.c.l.b16 %v187
    %v703 = vunpack.c.h.b16 %v187
    %v704 = vunpack.c.l.b16 %v188
    %v705 = vunpack.c.h.b16 %v188
    %v706 = vunpack.c.l.b16 %v189
    %v707 = vunpack.c.h.b16 %v189
    %v708 = vunpack.c.l.b16 %v190
    %v709 = vunpack.c.h.b16 %v190
    %v710 = vunpack.c.l.b16 %v191
    %v711 = vunpack.c.h.b16 %v191
    %v712 = vunpack.c.l.b16 %v192
    %v713 = vunpack.c.h.b16 %v192
    %v714 = vunpack.c.l.b16 %v193
    %v715 = vunpack.c.h.b16 %v193
    %v716 = vunpack.c.l.b16 %v194
    %v717 = vunpack.c.h.b16 %v194
    %v718 = vunpack.c.l.b16 %v195
    %v719 = vunpack.c.h.b16 %v195
    %v720 = vunpack.c.l.b16 %v196
    %v721 = vunpack.c.h.b16 %v196
    %v722 = vunpack.c.l.b16 %v197
    %v723 = vunpack.c.h.b16 %v197
    %v724 = vunpack.c.l.b16 %v198
    %v725 = vunpack.c.h.b16 %v198
    %v726 = vunpack.c.l.b16 %v199
    %v727 = vunpack.c.h.b16 %v199
    %v728 = vunpack.c.l.b16 %v200
    %v729 = vunpack.c.h.b16 %v200
    %v730 = vunpack.c.l.b16 %v201
    %v731 = vunpack.c.h.b16 %v201
    %v732 = vunpack.c.l.b16 %v202
    %v733 = vunpack.c.h.b16 %v202
    %v734 = vunpack.c.l.b16 %v203
    %v735 = vunpack.c.h.b16 %v203
    %v736 = vunpack.c.l.b16 %v204
    %v737 = vunpack.c.h.b16 %v204
    %v738 = vunpack.c.l.b16 %v205
    %v739 = vunpack.c.h.b16 %v205
    %v740 = vunpack.c.l.b16 %v206
    %v741 = vunpack.c.h.b16 %v206
    %v742 = vunpack.c.l.b16 %v207
    %v743 = vunpack.c.h.b16 %v207
    %v744 = vunpack.c.l.b16 %v208
    %v745 = vunpack.c.h.b16 %v208
    %v746 = vunpack.c.l.b16 %v209
    %v747 = vunpack.c.h.b16 %v209
    %v748 = vunpack.c.l.b16 %v210
    %v749 = vunpack.c.h.b16 %v210
    %v750 = vunpack.c.l.b16 %v211
    %v751 = vunpack.c.h.b16 %v211
    %v752 = vunpack.c.l.b16 %v212
    %v753 = vunpack.c.h.b16 %v212
    %v754 = vunpack.c.l.b16 %v213
    %v755 = vunpack.c.h.b16 %v213
    %v756 = vunpack.c.l.b16 %v214
    %v757 = vunpack.c.h.b16 %v214
    %v758 = vunpack.c.l.b16 %v215
    %v759 = vunpack.c.h.b16 %v215
    %v760 = vunpack.c.l.b16 %v216
    %v761 = vunpack.c.h.b16 %v216
    %v762 = vunpack.c.l.b16 %v217
    %v763 = vunpack.c.h.b16 %v217
    %v764 = vunpack.c.l.b16 %v218
    %v765 = vunpack.c.h.b16 %v218
    %v766 = vunpack.c.l.b16 %v219
    %v767 = vunpack.c.h.b16 %v219
    %v768 = vunpack.c.l.b16 %v220
    %v769 = vunpack.c.h.b16 %v220
    %v770 = vunpack.c.l.b16 %v221
    %v771 = vunpack.c.h.b16 %v221
    %v772 = vunpack.c.l.b16 %v222
    %v773 = vunpack.c.h.b16 %v222
    %v774 = vunpack.c.l.b16 %v223
    %v775 = vunpack.c.h.b16 %v223
    %v776 = vunpack.c.l.b16 %v224
    %v777 = vunpack.c.h.b16 %v224
    %v778 = vunpack.c.l.b16 %v225
    %v779 = vunpack.c.h.b16 %v225
    %v780 = vunpack.c.l.b16 %v226
    %v781 = vunpack.c.h.b16 %v226
    %v782 = vunpack.c.l.b16 %v227
    %v783 = vunpack.c.h.b16 %v227
    %v784 = vunpack.c.l.b16 %v228
    %v785 = vunpack.c.h.b16 %v228
    %v786 = vunpack.c.l.b16 %v229
    %v787 = vunpack.c.h.b16 %v229
    %v788 = vunpack.c.l.b16 %v230
    %v789 = vunpack.c.h.b16 %v230
    %v790 = vunpack.c.l.b16 %v231
    %v791 = vunpack.c.h.b16 %v231
    %v792 = vunpack.c.l.b16 %v232
    %v793 = vunpack.c.h.b16 %v232
    %v794 = vunpack.c.l.b16 %v233
    %v795 = vunpack.c.h.b16 %v233
    %v796 = vpack.c.b16 %v440, %v436
    %v797 = vpack.c.b16 %v441, %v437
    %v798 = vpack.c.b16 %v442, %v438
    %v799 = vpack.c.b16 %v443, %v439
    %v800 = vpack.c.b16 %v448, %v444
    %v801 = vpack.c.b16 %v449, %v445
    %v802 = vpack.c.b16 %v450, %v446
    %v803 = vpack.c.b16 %v451, %v447
    %v804 = vpack.c.b16 %v456, %v452
    %v805 = vpack.c.b16 %v457, %v453
    %v806 = vpack.c.b16 %v458, %v454
    %v807 = vpack.c.b16 %v459, %v455
    %v808 = vpack.c.b16 %v464, %v460
    %v809 = vpack.c.b16 %v465, %v461
    %v810 = vpack.c.b16 %v466, %v462
    %v811 = vpack.c.b16 %v467, %v463
    %v812 = vpack.c.b16 %v472, %v468
    %v813 = vpack.c.b16 %v473, %v469
    %v814 = vpack.c.b16 %v474, %v470
    %v815 = vpack.c.b16 %v475, %v471
    %v816 = vpack.c.b16 %v480, %v476
    %v817 = vpack.c.b16 %v481, %v477
    %v818 = vpack.c.b16 %v482, %v478
    %v819 = vpack.c.b16 %v483, %v479
    %v820 = vpack.c.b16 %v488, %v484
    %v821 = vpack.c.b16 %v489, %v485
    %v822 = vpack.c.b16 %v490, %v486
    %v823 = vpack.c.b16 %v491, %v487
    %v824 = vpack.c.b16 %v496, %v492
    %v825 = vpack.c.b16 %v497, %v493
    %v826 = vpack.c.b16 %v498, %v494
    %v827 = vpack.c.b16 %v499, %v495
    %v828 = vpack.c.b16 %v504, %v500
    %v829 = vpack.c.b16 %v505, %v501
    %v830 = vpack.c.b16 %v506, %v502
    %v831 = vpack.c.b16 %v507, %v503
    %v832 = vpack.c.b16 %v512, %v508
    %v833 = vpack.c.b16 %v513, %v509
    %v834 = vpack.c.b16 %v514, %v510
    %v835 = vpack.c.b16 %v515, %v511
    %v836 = vpack.c.b16 %v520, %v516
    %v837 = vpack.c.b16 %v521, %v517
    %v838 = vpack.c.b16 %v522, %v518
    %v839 = vpack.c.b16 %v523, %v519
    %v840 = vpack.c.b16 %v528, %v524
    %v841 = vpack.c.b16 %v529, %v525
    %v842 = vpack.c.b16 %v530, %v526
    %v843 = vpack.c.b16 %v531, %v527
    %v844 = vpack.c.b16 %v536, %v532
    %v845 = vpack.c.b16 %v537, %v533
    %v846 = vpack.c.b16 %v538, %v534
    %v847 = vpack.c.b16 %v539, %v535
    %v848 = vpack.c.b16 %v544, %v540
    %v849 = vpack.c.b16 %v545, %v541
    %v850 = vpack.c.b16 %v546, %v542
    %v851 = vpack.c.b16 %v547, %v543
    %v852 = vpack.c.b16 %v552, %v548
    %v853 = vpack.c.b16 %v553, %v549
    %v854 = vpack.c.b16 %v554, %v550
    %v855 = vpack.c.b16 %v555, %v551
    %v856 = vpack.c.b16 %v560, %v556
    %v857 = vpack.c.b16 %v561, %v557
    %v858 = vpack.c.b16 %v562, %v558
    %v859 = vpack.c.b16 %v563, %v559
    %v860 = vpack.c.b16 %v568, %v564
    %v861 = vpack.c.b16 %v569, %v565
    %v862 = vpack.c.b16 %v570, %v566
    %v863 = vpack.c.b16 %v571, %v567
    %v864 = vpack.c.b16 %v576, %v572
    %v865 = vpack.c.b16 %v577, %v573
    %v866 = vpack.c.b16 %v578, %v574
    %v867 = vpack.c.b16 %v579, %v575
    %v868 = vpack.c.b16 %v584, %v580
    %v869 = vpack.c.b16 %v585, %v581
    %v870 = vpack.c.b16 %v586, %v582
    %v871 = vpack.c.b16 %v587, %v583
    %v872 = vpack.c.b16 %v592, %v588
    %v873 = vpack.c.b16 %v593, %v589
    %v874 = vpack.c.b16 %v594, %v590
    %v875 = vpack.c.b16 %v595, %v591
    %v876 = vpack.c.b16 %v600, %v596
    %v877 = vpack.c.b16 %v601, %v597
    %v878 = vpack.c.b16 %v602, %v598
    %v879 = vpack.c.b16 %v603, %v599
    %v880 = vpack.c.b16 %v608, %v604
    %v881 = vpack.c.b16 %v609, %v605
    %v882 = vpack.c.b16 %v610, %v606
    %v883 = vpack.c.b16 %v611, %v607
    %v884 = vpack.c.b16 %v616, %v612
    %v885 = vpack.c.b16 %v617, %v613
    %v886 = vpack.c.b16 %v618, %v614
    %v887 = vpack.c.b16 %v619, %v615
    %v888 = vpack.c.b16 %v624, %v620
    %v889 = vpack.c.b16 %v625, %v621
    %v890 = vpack.c.b16 %v626, %v622
    %v891 = vpack.c.b16 %v627, %v623
    %v892 = vpack.c.b16 %v632, %v628
    %v893 = vpack.c.b16 %v633, %v629
    %v894 = vpack.c.b16 %v634, %v630
    %v895 = vpack.c.b16 %v635, %v631
    %v896 = vpack.c.b16 %v640, %v636
    %v897 = vpack.c.b16 %v641, %v637
    %v898 = vpack.c.b16 %v642, %v638
    %v899 = vpack.c.b16 %v643, %v639
    %v900 = vpack.c.b16 %v648, %v644
    %v901 = vpack.c.b16 %v649, %v645
    %v902 = vpack.c.b16 %v650, %v646
    %v903 = vpack.c.b16 %v651, %v647
    %v904 = vpack.c.b16 %v656, %v652
    %v905 = vpack.c.b16 %v657, %v653
    %v906 = vpack.c.b16 %v658, %v654
    %v907 = vpack.c.b16 %v659, %v655
    %v908 = vpack.c.b16 %v664, %v660
    %v909 = vpack.c.b16 %v665, %v661
    %v910 = vpack.c.b16 %v666, %v662
    %v911 = vpack.c.b16 %v667, %v663
    %v912 = vpack.c.b16 %v672, %v668
    %v913 = vpack.c.b16 %v673, %v669
    %v914 = vpack.c.b16 %v674, %v670
    %v915 = vpack.c.b16 %v675, %v671
    %v916 = vpack.c.b16 %v680, %v676
    %v917 = vpack.c.b16 %v681, %v677
    %v918 = vpack.c.b16 %v682, %v678
    %v919 = vpack.c.b16 %v683, %v679
    %v920 = vpack.c.b16 %v688, %v684
    %v921 = vpack.c.b16 %v689, %v685
    %v922 = vpack.c.b16 %v690, %v686
    %v923 = vpack.c.b16 %v691, %v687
    %v924 = vpack.c.b16 %v696, %v692
    %v925 = vpack.c.b16 %v697, %v693
    %v926 = vpack.c.b16 %v698, %v694
    %v927 = vpack.c.b16 %v699, %v695
    %v928 = vpack.c.b16 %v704, %v700
    %v929 = vpack.c.b16 %v705, %v701
    %v930 = vpack.c.b16 %v706, %v702
    %v931 = vpack.c.b16 %v707, %v703
    %v932 = vpack.c.b16 %v712, %v708
    %v933 = vpack.c.b16 %v713, %v709
    %v934 = vpack.c.b16 %v714, %v710
    %v935 = vpack.c.b16 %v715, %v711
    %v936 = vpack.c.b16 %v720, %v716
    %v937 = vpack.c.b16 %v721, %v717
    %v938 = vpack.c.b16 %v722, %v718
    %v939 = vpack.c.b16 %v723, %v719
    %v940 = vpack.c.b16 %v728, %v724
    %v941 = vpack.c.b16 %v729, %v725
    %v942 = vpack.c.b16 %v730, %v726
    %v943 = vpack.c.b16 %v731, %v727
    %v944 = vpack.c.b16 %v736, %v732
    %v945 = vpack.c.b16 %v737, %v733
    %v946 = vpack.c.b16 %v738, %v734
    %v947 = vpack.c.b16 %v739, %v735
    %v948 = vpack.c.b16 %v744, %v740
    %v949 = vpack.c.b16 %v745, %v741
    %v950 = vpack.c.b16 %v746, %v742
    %v951 = vpack.c.b16 %v747, %v743
    %v952 = vpack.c.b16 %v752, %v748
    %v953 = vpack.c.b16 %v753, %v749
    %v954 = vpack.c.b16 %v754, %v750
    %v955 = vpack.c.b16 %v755, %v751
    %v956 = vpack.c.b16 %v760, %v756
    %v957 = vpack.c.b16 %v761, %v757
    %v958 = vpack.c.b16 %v762, %v758
    %v959 = vpack.c.b16 %v763, %v759
    %v960 = vpack.c.b16 %v768, %v764
    %v961 = vpack.c.b16 %v769, %v765
    %v962 = vpack.c.b16 %v770, %v766
    %v963 = vpack.c.b16 %v771, %v767
    %v964 = vpack.c.b16 %v776, %v772
    %v965 = vpack.c.b16 %v777, %v773
    %v966 = vpack.c.b16 %v778, %v774
    %v967 = vpack.c.b16 %v779, %v775
    %v968 = vpack.c.b16 %v784, %v780
    %v969 = vpack.c.b16 %v785, %v781
    %v970 = vpack.c.b16 %v786, %v782
    %v971 = vpack.c.b16 %v787, %v783
    %v972 = vpack.c.b16 %v792, %v788
    %v973 = vpack.c.b16 %v793, %v789
    %v974 = vpack.c.b16 %v794, %v790
    %v975 = vpack.c.b16 %v795, %v791
    %vm1156 = vcmask 654336
    %v1158 = vsel %vm1156, %v53, 0
    %1160 = vmatprep.subr.bf16.mxu0 %v797
    %1161 = vmatpush1.bf16.msra.mxu0 %v796
    %1162 = vmatprep.subr.bf16.mxu0 %v801
    %1163 = vmatpush1.bf16.msra.mxu0 %v800
    %1164 = vmatprep.subr.bf16.mxu0 %v805
    %1165 = vmatpush1.bf16.msra.mxu0 %v804
    %1166 = vmatprep.subr.bf16.mxu0 %v809
    %1167 = vmatpush1.bf16.msra.mxu0 %v808
    %1168 = vmatprep.subr.bf16.mxu0 %v813
    %1169 = vmatpush1.bf16.msra.mxu0 %v812
    %1170 = vmatprep.subr.bf16.mxu0 %v817
    %1171 = vmatpush1.bf16.msra.mxu0 %v816
    %1172 = vmatprep.subr.bf16.mxu0 %v821
    %1173 = vmatpush1.bf16.msra.mxu0 %v820
    %1174 = vmatprep.subr.bf16.mxu0 %v825
    %1175 = vmatpush1.bf16.msra.mxu0 %v824
    %1176 = vmatprep.subr.bf16.mxu0 %v829
    %1177 = vmatpush1.bf16.msra.mxu0 %v828
    %1178 = vmatprep.subr.bf16.mxu0 %v833
    %1179 = vmatpush1.bf16.msra.mxu0 %v832
    %1180 = vmatprep.subr.bf16.mxu0 %v837
    %1181 = vmatpush1.bf16.msra.mxu0 %v836
    %1182 = vmatprep.subr.bf16.mxu0 %v841
    %1183 = vmatpush1.bf16.msra.mxu0 %v840
    %1184 = vmatprep.subr.bf16.mxu0 %v845
    %1185 = vmatpush1.bf16.msra.mxu0 %v844
    %1186 = vmatprep.subr.bf16.mxu0 %v849
    %1187 = vmatpush1.bf16.msra.mxu0 %v848
    %1188 = vmatprep.subr.bf16.mxu0 %v853
    %1189 = vmatpush1.bf16.msra.mxu0 %v852
    %1190 = vmatprep.subr.bf16.mxu0 %v857
    %1191 = vmatpush1.bf16.msra.mxu0 %v856
    %1192 = vmatprep.mubr.bf16.mxu0 %v49
    %1193 = vmatmul.mubr.bf16.gmra.mrb[0].mxu0 %v48
    %v1194 = vpop.f32.mrb[0].mxu0
    %v1195 = vadd.f32 %v239, %v1194
    %v1196 = vpop.f32.mrb[0].mxu0
    %v1197 = vadd.f32 %v243, %v1196
    %v1198 = vpop.f32.mrb[0].mxu0
    %v1199 = vpop.f32.mrb[0].mxu0
    %1200 = vdwg.mxu0
    %1201 = vmatprep.subr.bf16.mxu0 %v861
    %1202 = vmatpush1.bf16.msra.mxu0 %v860
    %1203 = vmatprep.subr.bf16.mxu0 %v865
    %1204 = vmatpush1.bf16.msra.mxu0 %v864
    %1205 = vmatprep.subr.bf16.mxu0 %v869
    %1206 = vmatpush1.bf16.msra.mxu0 %v868
    %1207 = vmatprep.subr.bf16.mxu0 %v873
    %1208 = vmatpush1.bf16.msra.mxu0 %v872
    %1209 = vmatprep.subr.bf16.mxu0 %v877
    %1210 = vmatpush1.bf16.msra.mxu0 %v876
    %1211 = vmatprep.subr.bf16.mxu0 %v881
    %1212 = vmatpush1.bf16.msra.mxu0 %v880
    %1213 = vmatprep.subr.bf16.mxu0 %v885
    %1214 = vmatpush1.bf16.msra.mxu0 %v884
    %1215 = vmatprep.subr.bf16.mxu0 %v889
    %1216 = vmatpush1.bf16.msra.mxu0 %v888
    %1217 = vmatprep.subr.bf16.mxu0 %v893
    %1218 = vmatpush1.bf16.msra.mxu0 %v892
    %1219 = vmatprep.subr.bf16.mxu0 %v897
    %1220 = vmatpush1.bf16.msra.mxu0 %v896
    %1221 = vmatprep.subr.bf16.mxu0 %v901
    %1222 = vmatpush1.bf16.msra.mxu0 %v900
    %1223 = vmatprep.subr.bf16.mxu0 %v905
    %1224 = vmatpush1.bf16.msra.mxu0 %v904
    %1225 = vmatprep.subr.bf16.mxu0 %v909
    %1226 = vmatpush1.bf16.msra.mxu0 %v908
    %1227 = vmatprep.subr.bf16.mxu0 %v913
    %1228 = vmatpush1.bf16.msra.mxu0 %v912
    %1229 = vmatprep.subr.bf16.mxu0 %v917
    %1230 = vmatpush1.bf16.msra.mxu0 %v916
    %1231 = vmatprep.subr.bf16.mxu0 %v921
    %1232 = vmatpush1.bf16.msra.mxu0 %v920
    %1233 = vmatprep.mubr.bf16.mxu0 %v51
    %1234 = vmatmul.mubr.bf16.gmra.mrb[0].mxu0 %v50
    %v1235 = vpop.f32.mrb[0].mxu0
    %v1236 = vadd.f32 %v1195, %v1235
    %v1237 = vpop.f32.mrb[0].mxu0
    %v1238 = vadd.f32 %v1197, %v1237
    %v1239 = vpop.f32.mrb[0].mxu0
    %v1240 = vpop.f32.mrb[0].mxu0
    %1241 = vdwg.mxu0
    %1242 = vmatprep.subr.bf16.mxu0 %v925
    %1243 = vmatpush1.bf16.msra.mxu0 %v924
    %1244 = vmatprep.subr.bf16.mxu0 %v929
    %1245 = vmatpush1.bf16.msra.mxu0 %v928
    %1246 = vmatprep.subr.bf16.mxu0 %v933
    %1247 = vmatpush1.bf16.msra.mxu0 %v932
    %1248 = vmatprep.subr.bf16.mxu0 %v937
    %1249 = vmatpush1.bf16.msra.mxu0 %v936
    %1250 = vmatprep.subr.bf16.mxu0 %v941
    %1251 = vmatpush1.bf16.msra.mxu0 %v940
    %1252 = vmatprep.subr.bf16.mxu0 %v945
    %1253 = vmatpush1.bf16.msra.mxu0 %v944
    %1254 = vmatprep.subr.bf16.mxu0 %v949
    %1255 = vmatpush1.bf16.msra.mxu0 %v948
    %1256 = vmatprep.subr.bf16.mxu0 %v953
    %1257 = vmatpush1.bf16.msra.mxu0 %v952
    %1258 = vmatprep.subr.bf16.mxu0 %v957
    %1259 = vmatpush1.bf16.msra.mxu0 %v956
    %1260 = vmatprep.subr.bf16.mxu0 %v961
    %1261 = vmatpush1.bf16.msra.mxu0 %v960
    %1262 = vmatprep.subr.bf16.mxu0 %v965
    %1263 = vmatpush1.bf16.msra.mxu0 %v964
    %1264 = vmatprep.subr.bf16.mxu0 %v969
    %1265 = vmatpush1.bf16.msra.mxu0 %v968
    %1266 = vmatprep.subr.bf16.mxu0 %v973
    %1267 = vmatpush1.bf16.msra.mxu0 %v972
    %1268 = vmatprep.subr.bf16.mxu0 0
    %1269 = vmatpush1.bf16.msra.mxu0 0
    %1270 = vmatprep.subr.bf16.mxu0 0
    %1271 = vmatpush1.bf16.msra.mxu0 0
    %1272 = vmatprep.subr.bf16.mxu0 0
    %1273 = vmatpush1.bf16.msra.mxu0 0
    %1274 = vmatprep.mubr.bf16.mxu0 %v1158
    %1275 = vmatmul.mubr.bf16.gmra.mrb[0].mxu0 %v52
    %v1276 = vpop.f32.mrb[0].mxu0
    %v1277 = vadd.f32 %v1236, %v1276
    %v1278 = vpop.f32.mrb[0].mxu0
    %v1279 = vadd.f32 %v1238, %v1278
    %v1280 = vpop.f32.mrb[0].mxu0
    %v1281 = vpop.f32.mrb[0].mxu0
    %1282 = vdwg.mxu0
    %1283 = vmatprep.subr.bf16.mxu0 %v799
    %1284 = vmatpush1.bf16.msra.mxu0 %v798
    %1285 = vmatprep.subr.bf16.mxu0 %v803
    %1286 = vmatpush1.bf16.msra.mxu0 %v802
    %1287 = vmatprep.subr.bf16.mxu0 %v807
    %1288 = vmatpush1.bf16.msra.mxu0 %v806
    %1289 = vmatprep.subr.bf16.mxu0 %v811
    %1290 = vmatpush1.bf16.msra.mxu0 %v810
    %1291 = vmatprep.subr.bf16.mxu0 %v815
    %1292 = vmatpush1.bf16.msra.mxu0 %v814
    %1293 = vmatprep.subr.bf16.mxu0 %v819
    %1294 = vmatpush1.bf16.msra.mxu0 %v818
    %1295 = vmatprep.subr.bf16.mxu0 %v823
    %1296 = vmatpush1.bf16.msra.mxu0 %v822
    %1297 = vmatprep.subr.bf16.mxu0 %v827
    %1298 = vmatpush1.bf16.msra.mxu0 %v826
    %1299 = vmatprep.subr.bf16.mxu0 %v831
    %1300 = vmatpush1.bf16.msra.mxu0 %v830
    %1301 = vmatprep.subr.bf16.mxu0 %v835
    %1302 = vmatpush1.bf16.msra.mxu0 %v834
    %1303 = vmatprep.subr.bf16.mxu0 %v839
    %1304 = vmatpush1.bf16.msra.mxu0 %v838
    %1305 = vmatprep.subr.bf16.mxu0 %v843
    %1306 = vmatpush1.bf16.msra.mxu0 %v842
    %1307 = vmatprep.subr.bf16.mxu0 %v847
    %1308 = vmatpush1.bf16.msra.mxu0 %v846
    %1309 = vmatprep.subr.bf16.mxu0 %v851
    %1310 = vmatpush1.bf16.msra.mxu0 %v850
    %1311 = vmatprep.subr.bf16.mxu0 %v855
    %1312 = vmatpush1.bf16.msra.mxu0 %v854
    %1313 = vmatprep.subr.bf16.mxu0 %v859
    %1314 = vmatpush1.bf16.msra.mxu0 %v858
    %1315 = vmatprep.mubr.bf16.mxu0 %v49
    %1316 = vmatmul.mubr.bf16.gmra.mrb[0].mxu0 %v48
    %v1317 = vpop.f32.mrb[0].mxu0
    %v1318 = vadd.f32 %v247, %v1317
    %v1319 = vpop.f32.mrb[0].mxu0
    %v1320 = vadd.f32 %v251, %v1319
    %v1321 = vpop.f32.mrb[0].mxu0
    %v1322 = vpop.f32.mrb[0].mxu0
    %1323 = vdwg.mxu0
    %1324 = vmatprep.subr.bf16.mxu0 %v863
    %1325 = vmatpush1.bf16.msra.mxu0 %v862
    %1326 = vmatprep.subr.bf16.mxu0 %v867
    %1327 = vmatpush1.bf16.msra.mxu0 %v866
    %1328 = vmatprep.subr.bf16.mxu0 %v871
    %1329 = vmatpush1.bf16.msra.mxu0 %v870
    %1330 = vmatprep.subr.bf16.mxu0 %v875
    %1331 = vmatpush1.bf16.msra.mxu0 %v874
    %1332 = vmatprep.subr.bf16.mxu0 %v879
    %1333 = vmatpush1.bf16.msra.mxu0 %v878
    %1334 = vmatprep.subr.bf16.mxu0 %v883
    %1335 = vmatpush1.bf16.msra.mxu0 %v882
    %1336 = vmatprep.subr.bf16.mxu0 %v887
    %1337 = vmatpush1.bf16.msra.mxu0 %v886
    %1338 = vmatprep.subr.bf16.mxu0 %v891
    %1339 = vmatpush1.bf16.msra.mxu0 %v890
    %1340 = vmatprep.subr.bf16.mxu0 %v895
    %1341 = vmatpush1.bf16.msra.mxu0 %v894
    %1342 = vmatprep.subr.bf16.mxu0 %v899
    %1343 = vmatpush1.bf16.msra.mxu0 %v898
    %1344 = vmatprep.subr.bf16.mxu0 %v903
    %1345 = vmatpush1.bf16.msra.mxu0 %v902
    %1346 = vmatprep.subr.bf16.mxu0 %v907
    %1347 = vmatpush1.bf16.msra.mxu0 %v906
    %1348 = vmatprep.subr.bf16.mxu0 %v911
    %1349 = vmatpush1.bf16.msra.mxu0 %v910
    %1350 = vmatprep.subr.bf16.mxu0 %v915
    %1351 = vmatpush1.bf16.msra.mxu0 %v914
    %1352 = vmatprep.subr.bf16.mxu0 %v919
    %1353 = vmatpush1.bf16.msra.mxu0 %v918
    %1354 = vmatprep.subr.bf16.mxu0 %v923
    %1355 = vmatpush1.bf16.msra.mxu0 %v922
    %1356 = vmatprep.mubr.bf16.mxu0 %v51
    %1357 = vmatmul.mubr.bf16.gmra.mrb[0].mxu0 %v50
    %v1358 = vpop.f32.mrb[0].mxu0
    %v1359 = vadd.f32 %v1318, %v1358
    %v1360 = vpop.f32.mrb[0].mxu0
    %v1361 = vadd.f32 %v1320, %v1360
    %v1362 = vpop.f32.mrb[0].mxu0
    %v1363 = vpop.f32.mrb[0].mxu0
    %1364 = vdwg.mxu0
    %1365 = vmatprep.subr.bf16.mxu0 %v927
    %1366 = vmatpush1.bf16.msra.mxu0 %v926
    %1367 = vmatprep.subr.bf16.mxu0 %v931
    %1368 = vmatpush1.bf16.msra.mxu0 %v930
    %1369 = vmatprep.subr.bf16.mxu0 %v935
    %1370 = vmatpush1.bf16.msra.mxu0 %v934
    %1371 = vmatprep.subr.bf16.mxu0 %v939
    %1372 = vmatpush1.bf16.msra.mxu0 %v938
    %1373 = vmatprep.subr.bf16.mxu0 %v943
    %1374 = vmatpush1.bf16.msra.mxu0 %v942
    %1375 = vmatprep.subr.bf16.mxu0 %v947
    %1376 = vmatpush1.bf16.msra.mxu0 %v946
    %1377 = vmatprep.subr.bf16.mxu0 %v951
    %1378 = vmatpush1.bf16.msra.mxu0 %v950
    %1379 = vmatprep.subr.bf16.mxu0 %v955
    %1380 = vmatpush1.bf16.msra.mxu0 %v954
    %1381 = vmatprep.subr.bf16.mxu0 %v959
    %1382 = vmatpush1.bf16.msra.mxu0 %v958
    %1383 = vmatprep.subr.bf16.mxu0 %v963
    %1384 = vmatpush1.bf16.msra.mxu0 %v962
    %1385 = vmatprep.subr.bf16.mxu0 %v967
    %1386 = vmatpush1.bf16.msra.mxu0 %v966
    %1387 = vmatprep.subr.bf16.mxu0 %v971
    %1388 = vmatpush1.bf16.msra.mxu0 %v970
    %1389 = vmatprep.subr.bf16.mxu0 %v975
    %1390 = vmatpush1.bf16.msra.mxu0 %v974
    %1391 = vmatprep.subr.bf16.mxu0 0
    %1392 = vmatpush1.bf16.msra.mxu0 0
    %1393 = vmatprep.subr.bf16.mxu0 0
    %1394 = vmatpush1.bf16.msra.mxu0 0
    %1395 = vmatprep.subr.bf16.mxu0 0
    %1396 = vmatpush1.bf16.msra.mxu0 0
    %1397 = vmatprep.mubr.bf16.mxu0 %v1158
    %1398 = vmatmul.mubr.bf16.gmra.mrb[0].mxu0 %v52
    %v1399 = vpop.f32.mrb[0].mxu0
    %v1400 = vadd.f32 %v1359, %v1399
    %v1401 = vpop.f32.mrb[0].mxu0
    %v1402 = vadd.f32 %v1361, %v1401
    %v1403 = vpop.f32.mrb[0].mxu0
    %v1404 = vpop.f32.mrb[0].mxu0
    %1405 = vdwg.mxu0
    %v1406 = vsub.f32 0.0, %v1277
    %v1407 = vsub.f32 0.0, %v1279
    %v1408 = vsub.f32 0.0, %v1400
    %v1409 = vsub.f32 0.0, %v1402
    %v1410 = vmul.f32 %v1406, 1.442695
    %v1411 = vpow.pop %v1410
    %v1412 = vmul.f32 %v1407, 1.442695
    %v1413 = vpow.pop %v1412
    %v1414 = vmul.f32 %v1408, 1.442695
    %v1415 = vpow.pop %v1414
    %v1416 = vmul.f32 %v1409, 1.442695
    %v1417 = vpow.pop %v1416
    %v1418 = vadd.f32 %v1411, 1.0
    %v1419 = vadd.f32 %v1413, 1.0
    %v1420 = vadd.f32 %v1415, 1.0
    %v1421 = vadd.f32 %v1417, 1.0
    %v1422 = vrcp.pop %v1418
    %v1423 = vrcp.pop %v1419
    %v1424 = vrcp.pop %v1420
    %v1425 = vrcp.pop %v1421
    %v1426 = vpack.c.bf16 %v1422, %v1422
    %v1427 = vpack.c.bf16 %v1423, %v1423
    %v1428 = vpack.c.bf16 %v1424, %v1424
    %v1429 = vpack.c.bf16 %v1425, %v1425
    %v1430 = vld [vmem:[%s3] sm:$0xf]
    %v1431 = vld [vmem:[%s3 + $0x4] sm:$0xf]
    %v1432 = vld [vmem:[%s3 + $0x8] sm:$0xf]
    %v1433 = vld [vmem:[%s3 + $0xc] sm:$0xf]
    %v1434 = vld [vmem:[%s3 + $0x10] sm:$0xf]
    %v1435 = vld [vmem:[%s3 + $0x14] sm:$0xf]
    %v1436 = vld [vmem:[%s3 + $0x18] sm:$0xf]
    %v1437 = vld [vmem:[%s3 + $0x1c] sm:$0xf]
    %v1438 = vld [vmem:[%s3 + $0x20] sm:$0xf]
    %v1439 = vld [vmem:[%s3 + $0x24] sm:$0xf]
    %v1440 = vld [vmem:[%s3 + $0x28] sm:$0xf]
    %v1441 = vld [vmem:[%s3 + $0x2c] sm:$0xf]
    %v1442 = vld [vmem:[%s3 + $0x30] sm:$0xf]
    %v1443 = vld [vmem:[%s3 + $0x34] sm:$0xf]
    %v1444 = vld [vmem:[%s3 + $0x38] sm:$0xf]
    %v1445 = vld [vmem:[%s3 + $0x3c] sm:$0xf]
    %v1446 = vld [vmem:[%s3 + $0x40] sm:$0xf]
    %v1447 = vld [vmem:[%s3 + $0x44] sm:$0xf]
    %v1448 = vld [vmem:[%s3 + $0x48] sm:$0xf]
    %v1449 = vld [vmem:[%s3 + $0x4c] sm:$0xf]
    %v1450 = vld [vmem:[%s3 + $0x50] sm:$0xf]
    %v1451 = vld [vmem:[%s3 + $0x54] sm:$0xf]
    %v1452 = vld [vmem:[%s3 + $0x58] sm:$0xf]
    %v1453 = vld [vmem:[%s3 + $0x5c] sm:$0xf]
    %v1454 = vld [vmem:[%s3 + $0x60] sm:$0xf]
    %v1455 = vld [vmem:[%s3 + $0x64] sm:$0xf]
    %v1456 = vld [vmem:[%s3 + $0x68] sm:$0xf]
    %v1457 = vld [vmem:[%s3 + $0x6c] sm:$0xf]
    %v1458 = vld [vmem:[%s3 + $0x70] sm:$0xf]
    %v1459 = vld [vmem:[%s3 + $0x74] sm:$0xf]
    %v1460 = vld [vmem:[%s3 + $0x78] sm:$0xf]
    %v1461 = vld [vmem:[%s3 + $0x7c] sm:$0xf]
    %v1462 = vld [vmem:[%s3 + $0x80] sm:$0xf]
    %v1463 = vld [vmem:[%s3 + $0x84] sm:$0xf]
    %v1464 = vld [vmem:[%s3 + $0x88] sm:$0xf]
    %v1465 = vld [vmem:[%s3 + $0x8c] sm:$0xf]
    %v1466 = vld [vmem:[%s3 + $0x90] sm:$0xf]
    %v1467 = vld [vmem:[%s3 + $0x94] sm:$0xf]
    %v1468 = vld [vmem:[%s3 + $0x98] sm:$0xf]
    %v1469 = vld [vmem:[%s3 + $0x9c] sm:$0xf]
    %v1470 = vld [vmem:[%s3 + $0xa0] sm:$0xf]
    %v1471 = vld [vmem:[%s3 + $0xa4] sm:$0xf]
    %v1472 = vld [vmem:[%s3 + $0xa8] sm:$0xf]
    %v1473 = vld [vmem:[%s3 + $0xac] sm:$0xf]
    %v1474 = vld [vmem:[%s3 + $0xb0] sm:$0xf]
    %v1475 = vld [vmem:[%s3 + $0xb4] sm:$0xf]
    %v1476 = vld [vmem:[%s3 + $0xb8] sm:$0xf]
    %v1477 = vld [vmem:[%s3 + $0xbc] sm:$0xf]
    %v1478 = vld [vmem:[%s3 + $0xc0] sm:$0xf]
    %v1479 = vld [vmem:[%s3 + $0xc4] sm:$0xf]
    %v1480 = vld [vmem:[%s3 + $0xc8] sm:$0xf]
    %v1481 = vld [vmem:[%s3 + $0xcc] sm:$0xf]
    %v1482 = vld [vmem:[%s3 + $0xd0] sm:$0xf]
    %v1483 = vld [vmem:[%s3 + $0xd4] sm:$0xf]
    %v1484 = vld [vmem:[%s3 + $0xd8] sm:$0xf]
    %v1485 = vld [vmem:[%s3 + $0xdc] sm:$0xf]
    %v1486 = vld [vmem:[%s3 + $0xe0] sm:$0xf]
    %v1487 = vld [vmem:[%s3 + $0xe4] sm:$0xf]
    %v1488 = vld [vmem:[%s3 + $0xe8] sm:$0xf]
    %v1489 = vld [vmem:[%s3 + $0xec] sm:$0xf]
    %v1490 = vld [vmem:[%s3 + $0xf0] sm:$0xf]
    %v1491 = vld [vmem:[%s3 + $0xf4] sm:$0xf]
    %v1492 = vld [vmem:[%s3 + $0xf8] sm:$0xf]
    %v1493 = vld [vmem:[%s3 + $0xfc] sm:$0xf]
    %v1494 = vld [vmem:[%s4] sm:$0x1]
    %v1496 = vlaneseq
    %v1497 = vshrl.u32 %v1496, 7
    %v1498 = vsub.s32 0, %v1497
    %v1499 = vrot.slane %v1494, %v1498
    %v1565 = vunpack.c.l.b16 %v1430
    %v1566 = vunpack.c.l.b16 %v1431
    %v1567 = vunpack.c.l.b16 %v1432
    %v1568 = vunpack.c.l.b16 %v1433
    %v1569 = vunpack.c.l.b16 %v1434
    %v1570 = vunpack.c.l.b16 %v1435
    %v1571 = vunpack.c.l.b16 %v1436
    %v1572 = vunpack.c.l.b16 %v1437
    %v1573 = vunpack.c.l.b16 %v1438
    %v1574 = vunpack.c.l.b16 %v1439
    %v1575 = vunpack.c.l.b16 %v1440
    %v1576 = vunpack.c.l.b16 %v1441
    %v1577 = vunpack.c.l.b16 %v1442
    %v1578 = vunpack.c.l.b16 %v1443
    %v1579 = vunpack.c.l.b16 %v1444
    %v1580 = vunpack.c.l.b16 %v1445
    %v1581 = vunpack.c.l.b16 %v1446
    %v1582 = vunpack.c.l.b16 %v1447
    %v1583 = vunpack.c.l.b16 %v1448
    %v1584 = vunpack.c.l.b16 %v1449
    %v1585 = vunpack.c.l.b16 %v1450
    %v1586 = vunpack.c.l.b16 %v1451
    %v1587 = vunpack.c.l.b16 %v1452
    %v1588 = vunpack.c.l.b16 %v1453
    %v1589 = vunpack.c.l.b16 %v1454
    %v1590 = vunpack.c.l.b16 %v1455
    %v1591 = vunpack.c.l.b16 %v1456
    %v1592 = vunpack.c.l.b16 %v1457
    %v1593 = vunpack.c.l.b16 %v1458
    %v1594 = vunpack.c.l.b16 %v1459
    %v1595 = vunpack.c.l.b16 %v1460
    %v1596 = vunpack.c.l.b16 %v1461
    %v1597 = vunpack.c.l.b16 %v1462
    %v1598 = vunpack.c.l.b16 %v1463
    %v1599 = vunpack.c.l.b16 %v1464
    %v1600 = vunpack.c.l.b16 %v1465
    %v1601 = vunpack.c.l.b16 %v1466
    %v1602 = vunpack.c.l.b16 %v1467
    %v1603 = vunpack.c.l.b16 %v1468
    %v1604 = vunpack.c.l.b16 %v1469
    %v1605 = vunpack.c.l.b16 %v1470
    %v1606 = vunpack.c.l.b16 %v1471
    %v1607 = vunpack.c.l.b16 %v1472
    %v1608 = vunpack.c.l.b16 %v1473
    %v1609 = vunpack.c.l.b16 %v1474
    %v1610 = vunpack.c.l.b16 %v1475
    %v1611 = vunpack.c.l.b16 %v1476
    %v1612 = vunpack.c.l.b16 %v1477
    %v1613 = vunpack.c.l.b16 %v1478
    %v1614 = vunpack.c.l.b16 %v1479
    %v1615 = vunpack.c.l.b16 %v1480
    %v1616 = vunpack.c.l.b16 %v1481
    %v1617 = vunpack.c.l.b16 %v1482
    %v1618 = vunpack.c.l.b16 %v1483
    %v1619 = vunpack.c.l.b16 %v1484
    %v1620 = vunpack.c.l.b16 %v1485
    %v1621 = vunpack.c.l.b16 %v1486
    %v1622 = vunpack.c.l.b16 %v1487
    %v1623 = vunpack.c.l.b16 %v1488
    %v1624 = vunpack.c.l.b16 %v1489
    %v1625 = vunpack.c.l.b16 %v1490
    %v1626 = vunpack.c.l.b16 %v1491
    %v1627 = vunpack.c.l.b16 %v1492
    %v1628 = vunpack.c.l.b16 %v1493
    %v1629 = vpack.c.b16 %v1566, %v1565
    %v1630 = vpack.c.b16 %v1568, %v1567
    %v1631 = vpack.c.b16 %v1570, %v1569
    %v1632 = vpack.c.b16 %v1572, %v1571
    %v1633 = vpack.c.b16 %v1574, %v1573
    %v1634 = vpack.c.b16 %v1576, %v1575
    %v1635 = vpack.c.b16 %v1578, %v1577
    %v1636 = vpack.c.b16 %v1580, %v1579
    %v1637 = vpack.c.b16 %v1582, %v1581
    %v1638 = vpack.c.b16 %v1584, %v1583
    %v1639 = vpack.c.b16 %v1586, %v1585
    %v1640 = vpack.c.b16 %v1588, %v1587
    %v1641 = vpack.c.b16 %v1590, %v1589
    %v1642 = vpack.c.b16 %v1592, %v1591
    %v1643 = vpack.c.b16 %v1594, %v1593
    %v1644 = vpack.c.b16 %v1596, %v1595
    %v1645 = vpack.c.b16 %v1598, %v1597
    %v1646 = vpack.c.b16 %v1600, %v1599
    %v1647 = vpack.c.b16 %v1602, %v1601
    %v1648 = vpack.c.b16 %v1604, %v1603
    %v1649 = vpack.c.b16 %v1606, %v1605
    %v1650 = vpack.c.b16 %v1608, %v1607
    %v1651 = vpack.c.b16 %v1610, %v1609
    %v1652 = vpack.c.b16 %v1612, %v1611
    %v1653 = vpack.c.b16 %v1614, %v1613
    %v1654 = vpack.c.b16 %v1616, %v1615
    %v1655 = vpack.c.b16 %v1618, %v1617
    %v1656 = vpack.c.b16 %v1620, %v1619
    %v1657 = vpack.c.b16 %v1622, %v1621
    %v1658 = vpack.c.b16 %v1624, %v1623
    %v1659 = vpack.c.b16 %v1626, %v1625
    %v1660 = vpack.c.b16 %v1628, %v1627
    %1693 = vmatprep.subr.bf16.mxu0 0
    %1694 = vmatpush1.bf16.msra.mxu0 %v1629
    %1695 = vmatprep.subr.bf16.mxu0 0
    %1696 = vmatpush1.bf16.msra.mxu0 %v1630
    %1697 = vmatprep.subr.bf16.mxu0 0
    %1698 = vmatpush1.bf16.msra.mxu0 %v1631
    %1699 = vmatprep.subr.bf16.mxu0 0
    %1700 = vmatpush1.bf16.msra.mxu0 %v1632
    %1701 = vmatprep.subr.bf16.mxu0 0
    %1702 = vmatpush1.bf16.msra.mxu0 %v1633
    %1703 = vmatprep.subr.bf16.mxu0 0
    %1704 = vmatpush1.bf16.msra.mxu0 %v1634
    %1705 = vmatprep.subr.bf16.mxu0 0
    %1706 = vmatpush1.bf16.msra.mxu0 %v1635
    %1707 = vmatprep.subr.bf16.mxu0 0
    %1708 = vmatpush1.bf16.msra.mxu0 %v1636
    %1709 = vmatprep.subr.bf16.mxu0 0
    %1710 = vmatpush1.bf16.msra.mxu0 %v1637
    %1711 = vmatprep.subr.bf16.mxu0 0
    %1712 = vmatpush1.bf16.msra.mxu0 %v1638
    %1713 = vmatprep.subr.bf16.mxu0 0
    %1714 = vmatpush1.bf16.msra.mxu0 %v1639
    %1715 = vmatprep.subr.bf16.mxu0 0
    %1716 = vmatpush1.bf16.msra.mxu0 %v1640
    %1717 = vmatprep.subr.bf16.mxu0 0
    %1718 = vmatpush1.bf16.msra.mxu0 %v1641
    %1719 = vmatprep.subr.bf16.mxu0 0
    %1720 = vmatpush1.bf16.msra.mxu0 %v1642
    %1721 = vmatprep.subr.bf16.mxu0 0
    %1722 = vmatpush1.bf16.msra.mxu0 %v1643
    %1723 = vmatprep.subr.bf16.mxu0 0
    %1724 = vmatpush1.bf16.msra.mxu0 %v1644
    %1725 = vmatprep.mubr.bf16.mxu0 %v1427
    %1726 = vmatmul.mubr.bf16.gmra.mrb[0].mxu0 %v1426
    %v1727 = vpop.f32.mrb[0].mxu0
    %v1728 = vadd.f32 %v1499, %v1727
    %v1729 = vpop.f32.mrb[0].mxu0
    %v1730 = vpop.f32.mrb[0].mxu0
    %v1731 = vpop.f32.mrb[0].mxu0
    %1732 = vdwg.mxu0
    %1733 = vmatprep.subr.bf16.mxu0 0
    %1734 = vmatpush1.bf16.msra.mxu0 %v1645
    %1735 = vmatprep.subr.bf16.mxu0 0
    %1736 = vmatpush1.bf16.msra.mxu0 %v1646
    %1737 = vmatprep.subr.bf16.mxu0 0
    %1738 = vmatpush1.bf16.msra.mxu0 %v1647
    %1739 = vmatprep.subr.bf16.mxu0 0
    %1740 = vmatpush1.bf16.msra.mxu0 %v1648
    %1741 = vmatprep.subr.bf16.mxu0 0
    %1742 = vmatpush1.bf16.msra.mxu0 %v1649
    %1743 = vmatprep.subr.bf16.mxu0 0
    %1744 = vmatpush1.bf16.msra.mxu0 %v1650
    %1745 = vmatprep.subr.bf16.mxu0 0
    %1746 = vmatpush1.bf16.msra.mxu0 %v1651
    %1747 = vmatprep.subr.bf16.mxu0 0
    %1748 = vmatpush1.bf16.msra.mxu0 %v1652
    %1749 = vmatprep.subr.bf16.mxu0 0
    %1750 = vmatpush1.bf16.msra.mxu0 %v1653
    %1751 = vmatprep.subr.bf16.mxu0 0
    %1752 = vmatpush1.bf16.msra.mxu0 %v1654
    %1753 = vmatprep.subr.bf16.mxu0 0
    %1754 = vmatpush1.bf16.msra.mxu0 %v1655
    %1755 = vmatprep.subr.bf16.mxu0 0
    %1756 = vmatpush1.bf16.msra.mxu0 %v1656
    %1757 = vmatprep.subr.bf16.mxu0 0
    %1758 = vmatpush1.bf16.msra.mxu0 %v1657
    %1759 = vmatprep.subr.bf16.mxu0 0
    %1760 = vmatpush1.bf16.msra.mxu0 %v1658
    %1761 = vmatprep.subr.bf16.mxu0 0
    %1762 = vmatpush1.bf16.msra.mxu0 %v1659
    %1763 = vmatprep.subr.bf16.mxu0 0
    %1764 = vmatpush1.bf16.msra.mxu0 %v1660
    %1765 = vmatprep.mubr.bf16.mxu0 %v1429
    %1766 = vmatmul.mubr.bf16.gmra.mrb[0].mxu0 %v1428
    %v1767 = vpop.f32.mrb[0].mxu0
    %v1768 = vadd.f32 %v1728, %v1767
    %v1769 = vpop.f32.mrb[0].mxu0
    %v1770 = vpop.f32.mrb[0].mxu0
    %v1771 = vpop.f32.mrb[0].mxu0
    %1772 = vdwg.mxu0
    %v1773 = vsub.f32 0.0, %v1768
    %v1774 = vmul.f32 %v1773, 1.442695
    %v1775 = vpow.pop %v1774
    %v1776 = vadd.f32 %v1775, 1.0
    %v1777 = vrcp.pop %v1776
    %v1778 = vld [vmem:[%s5] sm:$0x1]
    %v1780 = vlaneseq
    %v1781 = vshrl.u32 %v1780, 7
    %v1782 = vsub.s32 0, %v1781
    %v1783 = vrot.slane %v1778, %v1782
    %v1785 = vmul.f32 %v1777, %v1783
    %vm1786 = vcmask 523264
    %v1787 = vsel %vm1786, %v1785, 0.0
    %1788 = vadd.xlane.f32.xlu0 %v1787
    %v1789 = vpop.xlane.xlu0 %1788
    %s1790 = sld [smem:[#allocation2]]
    %v1791 = vstv %s1790
    %v1792 = vadd.f32 %v1789, %v1791
    %v1793 = vrot.slane %v1792, 4
    %v1794 = vmax.f32 %v1792, %v1793
    %v1795 = vrot.slane %v1794, 2
    %v1796 = vmax.f32 %v1794, %v1795
    %v1797 = vrot.slane %v1796, 1
    %v1798 = vmax.f32 %v1796, %v1797
    %v1799 = vsub.f32 %v1792, %v1798
    %v1800 = vmul.f32 %v1799, 1.442695
    %v1801 = vpow.pop %v1800
    %v1802 = vrot.slane %v1801, 4
    %v1803 = vadd.f32 %v1801, %v1802
    %v1804 = vrot.slane %v1803, 2
    %v1805 = vadd.f32 %v1803, %v1804
    %v1806 = vrot.slane %v1805, 1
    %v1807 = vadd.f32 %v1805, %v1806
    %v1808 = vrcp.pop %v1807
    %v1809 = vmul.f32 %v1801, %v1808
    %vm1810 = vcmask 7168
    %1811 = vst.msk [vmem:[%s7] sm:$0xff] %vm1810, %v1809
    // Predicated region
    $region34: #{tpu_custom_call.1} parent=1 // pred_check
      _
    $region35: #{tpu_custom_call.1} parent=1 // pred_check_branch
      %1813 = sbr.rel (0) target = $region37
    $region36: #{tpu_custom_call.1} parent=1 // pred_region
      _
    $region37: #{tpu_custom_call.1} parent=1 // pred_fallthru
      _
    // Predicated region
    $region38: #{tpu_custom_call.1} parent=1 // pred_check
      _
    $region39: #{tpu_custom_call.1} parent=1 // pred_check_branch
      %1815 = sbr.rel (0) target = $region41
    $region40: #{tpu_custom_call.1} parent=1 // pred_region
      _
    $region41: #{tpu_custom_call.1} parent=1 // pred_fallthru
      _
    %1816 = vsyncpa [#allocation4], 1

</llo_original>
